<compile_context>
chip_gen: v5e
topology: v5e:2x2
jax: 0.10.0
libtpu: 0.0.40
codegen_flags: <defaults>
</compile_context>

<pallas_src>
import jax
import jax.numpy as jnp
from jax.experimental import pallas as pl
from jax.experimental.pallas import tpu as pltpu


def _mapminmax_backward_kernel(y_ref, params_ref, o_ref):
    # params_ref: (2, tile_s) resident block; row 0 = inv_gain, row 1 = bias.
    inv_gain = params_ref[0:1, :]               # (1, tile_s) -> broadcast over rows
    bias = params_ref[1:2, :]                   # (1, tile_s)
    y = y_ref[...].astype(jnp.float32)          # (tile_b, tile_s)
    o_ref[...] = (y * inv_gain + bias).astype(o_ref.dtype)


def _largest_divisor_tile(dim, max_tile, align):
    """Largest divisor of `dim` that is <= max_tile, preferring multiples of `align`."""
    if dim <= max_tile:
        return dim
    start = (max_tile // align) * align
    for t in range(start, align - 1, -align):
        if dim % t == 0:
            return t
    for t in range(min(dim, max_tile), 0, -1):
        if dim % t == 0:
            return t
    return dim


def mapminmax_backward(y, gain, xoffset, ymin=-1.0, *,
                       tile_b=None, tile_s=None, force_pallas=False):
    """x = (y - ymin) / gain + xoffset, with per-feature gain/xoffset over the last axis."""
    B, S = y.shape
    assert gain.shape == (S,) and xoffset.shape == (S,)

    # Fold: (y - ymin)/gain + xoffset == y*inv_gain + (xoffset - ymin*inv_gain).
    # NOTE: caller must guarantee nonzero gain (as in the PyTorch module's randn init).
    inv_gain = 1.0 / gain.astype(jnp.float32)
    bias = xoffset.astype(jnp.float32) - ymin * inv_gain

    # Small-problem bypass: pallas_call launch + grid-step overhead dwarfs the
    # HBM traffic; let XLA fuse the elementwise op with producers/consumers.
    if not force_pallas and y.size * y.dtype.itemsize < (1 << 20):
        out = y.astype(jnp.float32) * inv_gain[None, :] + bias[None, :]
        return out.astype(y.dtype)

    params = jnp.stack([inv_gain, bias], axis=0)        # (2, S), resident in VMEM

    # Lane-axis tile: full S unless it is large and 128-divisible (keeps stores
    # unmasked / lane-dense and bounds VMEM use for very wide feature dims).
    if tile_s is None:
        if S % 128 == 0 and S > 4096:
            tile_s = _largest_divisor_tile(S // 128, 4096 // 128, 1) * 128
        else:
            tile_s = S
    assert S % tile_s == 0

    # Batch tile from a ~2 MiB budget per y tile (2x in + 2x out double buffers
    # stay well under scoped VMEM defaults on v5e/v6e/v7x).
    if tile_b is None:
        row_bytes = tile_s * 4
        budget_rows = max(8, (2 << 20) // max(row_bytes, 1))
        tile_b = _largest_divisor_tile(B, budget_rows, 8)
    assert B % tile_b == 0

    grid = (B // tile_b, S // tile_s)
    return pl.pallas_call(
        _mapminmax_backward_kernel,
        out_shape=jax.ShapeDtypeStruct((B, S), y.dtype),
        grid_spec=pltpu.PrefetchScalarGridSpec(
            num_scalar_prefetch=0,
            grid=grid,
            in_specs=[
                pl.BlockSpec((tile_b, tile_s), lambda i, j: (i, j)),   # y tile
                pl.BlockSpec((2, tile_s), lambda i, j: (0, j)),        # packed inv_gain/bias
            ],
            out_specs=pl.BlockSpec((tile_b, tile_s), lambda i, j: (i, j)),
        ),
        compiler_params=pltpu.CompilerParams(
            dimension_semantics=("parallel", "parallel"),
        ),
    )(y, params)


if __name__ == "__main__":
    # Small shapes consistent with the module: batch=256, size=128
    # (size=128 keeps the lane axis dense; batch is a multiple of 8).
    B, S = 256, 128
    key = jax.random.PRNGKey(0)
    k_y, k_g, k_o = jax.random.split(key, 3)

    y = jax.random.normal(k_y, (B, S), dtype=jnp.float32)
    # Deterministic "randn" parameter init (as in nn.Parameter(torch.randn(size))).
    gain = jax.random.normal(k_g, (S,), dtype=jnp.float32)
    # Avoid exact/near-zero gain in the test harness (division).
    gain = jnp.where(jnp.abs(gain) < 1e-3, 1e-3, gain)
    xoffset = jax.random.normal(k_o, (S,), dtype=jnp.float32)

    # Pallas path (forced so the kernel itself is exercised at this small size).
    out = mapminmax_backward(y, gain, xoffset, ymin=-1.0, force_pallas=True)
    out = jax.block_until_ready(out)

    # Reference check in plain JAX (original sub/div/add form).
    ref = (y - (-1.0)) / gain[None, :] + xoffset[None, :]
    assert jnp.allclose(out, ref, atol=1e-4, rtol=1e-4), "pallas mismatch vs reference"

    # The small-size XLA-fused bypass path must match too.
    out_small = jax.block_until_ready(mapminmax_backward(y, gain, xoffset, ymin=-1.0))
    assert jnp.allclose(out_small, ref, atol=1e-4, rtol=1e-4), "bypass mismatch vs reference"

    print("KERNEL_OK")
</pallas_src>

<mosaic_0001>
module attributes {stable_mosaic.version = 11 : i64} {
  func.func @_mapminmax_backward_kernel(%arg0: i32, %arg1: i32, %arg2: memref<256x128xf32, #tpu.memory_space<vmem>>, %arg3: memref<2x128xf32, #tpu.memory_space<vmem>>, %arg4: memref<256x128xf32, #tpu.memory_space<vmem>>) attributes {dimension_semantics = [#tpu.dimension_semantics<parallel>, #tpu.dimension_semantics<parallel>], iteration_bounds = array<i64: 1, 1>, scalar_prefetch = 0 : i64, scratch_operands = 0 : i64, tpu.core_type = #tpu.core_type<tc>, window_params = [{transform_indices = @transform_0, window_bounds = array<i64: 256, 128>}, {transform_indices = @transform_1, window_bounds = array<i64: 2, 128>}, {transform_indices = @transform_2, window_bounds = array<i64: 256, 128>}]} {
    %c0 = arith.constant 0 : index
    %c0_0 = arith.constant 0 : index
    %0 = vector.load %arg3[%c0, %c0_0] : memref<2x128xf32, #tpu.memory_space<vmem>>, vector<1x128xf32>
    %c1 = arith.constant 1 : index
    %c0_1 = arith.constant 0 : index
    %1 = vector.load %arg3[%c1, %c0_1] : memref<2x128xf32, #tpu.memory_space<vmem>>, vector<1x128xf32>
    %c0_2 = arith.constant 0 : index
    %c0_3 = arith.constant 0 : index
    %2 = vector.load %arg2[%c0_2, %c0_3] : memref<256x128xf32, #tpu.memory_space<vmem>>, vector<256x128xf32>
    %3 = vector.broadcast %0 : vector<1x128xf32> to vector<256x128xf32>
    %4 = arith.mulf %2, %3 : vector<256x128xf32>
    %5 = vector.broadcast %1 : vector<1x128xf32> to vector<256x128xf32>
    %6 = arith.addf %4, %5 : vector<256x128xf32>
    %c0_4 = arith.constant 0 : index
    %c0_5 = arith.constant 0 : index
    %7 = vector.load %arg4[%c0_4, %c0_5] : memref<256x128xf32, #tpu.memory_space<vmem>>, vector<256x128xf32>
    tpu.vector_store %arg4[%c0_4, %c0_5], %6 {strides = array<i32>} : memref<256x128xf32, #tpu.memory_space<vmem>>, vector<256x128xf32>,
    return
  }
  func.func @transform_0(%arg0: i32, %arg1: i32) -> (i32, i32) {
    %c0_i32 = arith.constant 0 : i32
    return %arg0, %arg1 : i32, i32
  }
  func.func @transform_1(%arg0: i32, %arg1: i32) -> (i32, i32) {
    %c0_i32 = arith.constant 0 : i32
    %c0_i32_0 = arith.constant 0 : i32
    return %c0_i32, %arg1 : i32, i32
  }
  func.func @transform_2(%arg0: i32, %arg1: i32) -> (i32, i32) {
    %c0_i32 = arith.constant 0 : i32
    return %arg0, %arg1 : i32, i32
  }
}

</mosaic_0001>

<llo_original>
// kernel: tpu_custom_call.1
$region0: #{tpu_custom_call.1}
  #allocation0 [shape = 'u32[]', space=smem, size = 0x4, offset = 0x4, fixed_abs, tag = 'smem constant byte address 0x4 - core index']
  #allocation1 [shape = 'u32[72,128]{1,0:T(1,128)}', space=vmem, size = 0x9000, scoped, tag = 'internal scratch']
  %s0 = inlined_call_operand.hbm [shape: f32[256,128], index: 0, kind: input, shape index: {}]
  %s1 = inlined_call_operand.hbm [shape: f32[2,128], index: 1, kind: input, shape index: {}]
  %s2 = inlined_call_operand.hbm [shape: f32[256,128], index: 2, kind: output, shape index: {}]
  %s3 = sld [smem:[#allocation0]]
  $region26: #{tpu_custom_call.1} parent=0
    _
  %s5 = ssub.s32 1, %s3
  %s6 = scalar_select 0, %s5, %s3
  $region1: #{tpu_custom_call.1} parent=0
    #allocation2 [shape = 'u8[131072]{0}', space=vmem, size = 0x20000, scoped, tag = 'input window, operand 0, single buffered']
    #allocation3 [shape = 's32[1]{0}', space=sflag, size = 0x4, scoped, tag = 'scoped memory for tpu_custom_call.1']
    #allocation4 [shape = 's32[1]{0}', space=sflag, size = 0x4, scoped, tag = 'scoped memory for tpu_custom_call.1']
    #allocation5 [shape = 'u8[1024]{0}', space=vmem, size = 0x400, scoped, tag = 'input window, operand 1, single buffered']
    #allocation6 [shape = 's32[1]{0}', space=sflag, size = 0x4, scoped, tag = 'scoped memory for tpu_custom_call.1']
    #allocation7 [shape = 'u8[131072]{0}', space=vmem, size = 0x20000, scoped, tag = 'output window, operand 0, single buffered']
    %7 = vsyncpa [#allocation3], 0
    %8 = vsyncpa [#allocation6], 0
    %9 = vsyncpa [#allocation4], 0
    // Predicated region
    $region2: #{tpu_custom_call.1} parent=1 // pred_check
      _
    $region3: #{tpu_custom_call.1} parent=1 // pred_check_branch
      %11 = sbr.rel (0) target = $region5
    $region4: #{tpu_custom_call.1} parent=1 // pred_region
      %13 = vsyncadd [#allocation3], 0
      %s14 = sshll.u32 %s0, 4
      %s15 = int_to_ptr.hbm [resolvable:$true] %s14
      %s16 = sshll.u32 [#allocation2], 4
      %s17 = int_to_ptr.vmem [resolvable:$true] %s16
      %22 = dma.hbm_to_vmem [thread:$0]  %s15, 4096, %s17, [#allocation3], 128, 128, 8
    $region5: #{tpu_custom_call.1} parent=1 // pred_fallthru
      _
    // Predicated region
    $region6: #{tpu_custom_call.1} parent=1 // pred_check
      _
    $region7: #{tpu_custom_call.1} parent=1 // pred_check_branch
      %24 = sbr.rel (0) target = $region9
    $region8: #{tpu_custom_call.1} parent=1 // pred_region
      %26 = vsyncadd [#allocation6], 0
      %s28 = sshll.u32 %s1, 4
      %s29 = int_to_ptr.hbm [resolvable:$true] %s28
      %s30 = sshll.u32 [#allocation5], 4
      %s31 = int_to_ptr.vmem [resolvable:$true] %s30
      %33 = dma.hbm_to_vmem [thread:$0]  %s29, 32, %s31, [#allocation6]
    $region9: #{tpu_custom_call.1} parent=1 // pred_fallthru
      _
    // Predicated region
    $region10: #{tpu_custom_call.1} parent=1 // pred_check
      _
    $region11: #{tpu_custom_call.1} parent=1 // pred_check_branch
      %35 = sbr.rel (0) target = $region13
    $region12: #{tpu_custom_call.1} parent=1 // pred_region
      %37 = dma.done [#allocation3], 4096
    $region13: #{tpu_custom_call.1} parent=1 // pred_fallthru
      _
    // Predicated region
    $region14: #{tpu_custom_call.1} parent=1 // pred_check
      _
    $region15: #{tpu_custom_call.1} parent=1 // pred_check_branch
      %39 = sbr.rel (0) target = $region17
    $region16: #{tpu_custom_call.1} parent=1 // pred_region
      %41 = dma.done [#allocation6], 32
    $region17: #{tpu_custom_call.1} parent=1 // pred_fallthru
      _
    %v42 = vld [vmem:[#allocation5] sm:$0x1]
    %v43 = vld [vmem:[#allocation5 + $0x1] sm:$0x1]
    %v44 = vld [vmem:[#allocation2] sm:$0xff]
    %v45 = vld [vmem:[#allocation2 + $0x8] sm:$0xff]
    %v46 = vld [vmem:[#allocation2 + $0x10] sm:$0xff]
    %v47 = vld [vmem:[#allocation2 + $0x18] sm:$0xff]
    %v48 = vld [vmem:[#allocation2 + $0x20] sm:$0xff]
    %v49 = vld [vmem:[#allocation2 + $0x28] sm:$0xff]
    %v50 = vld [vmem:[#allocation2 + $0x30] sm:$0xff]
    %v51 = vld [vmem:[#allocation2 + $0x38] sm:$0xff]
    %v52 = vld [vmem:[#allocation2 + $0x40] sm:$0xff]
    %v53 = vld [vmem:[#allocation2 + $0x48] sm:$0xff]
    %v54 = vld [vmem:[#allocation2 + $0x50] sm:$0xff]
    %v55 = vld [vmem:[#allocation2 + $0x58] sm:$0xff]
    %v56 = vld [vmem:[#allocation2 + $0x60] sm:$0xff]
    %v57 = vld [vmem:[#allocation2 + $0x68] sm:$0xff]
    %v58 = vld [vmem:[#allocation2 + $0x70] sm:$0xff]
    %v59 = vld [vmem:[#allocation2 + $0x78] sm:$0xff]
    %v60 = vld [vmem:[#allocation2 + $0x80] sm:$0xff]
    %v61 = vld [vmem:[#allocation2 + $0x88] sm:$0xff]
    %v62 = vld [vmem:[#allocation2 + $0x90] sm:$0xff]
    %v63 = vld [vmem:[#allocation2 + $0x98] sm:$0xff]
    %v64 = vld [vmem:[#allocation2 + $0xa0] sm:$0xff]
    %v65 = vld [vmem:[#allocation2 + $0xa8] sm:$0xff]
    %v66 = vld [vmem:[#allocation2 + $0xb0] sm:$0xff]
    %v67 = vld [vmem:[#allocation2 + $0xb8] sm:$0xff]
    %v68 = vld [vmem:[#allocation2 + $0xc0] sm:$0xff]
    %v69 = vld [vmem:[#allocation2 + $0xc8] sm:$0xff]
    %v70 = vld [vmem:[#allocation2 + $0xd0] sm:$0xff]
    %v71 = vld [vmem:[#allocation2 + $0xd8] sm:$0xff]
    %v72 = vld [vmem:[#allocation2 + $0xe0] sm:$0xff]
    %v73 = vld [vmem:[#allocation2 + $0xe8] sm:$0xff]
    %v74 = vld [vmem:[#allocation2 + $0xf0] sm:$0xff]
    %v75 = vld [vmem:[#allocation2 + $0xf8] sm:$0xff]
    %v76 = vperm.slane %v42, 0
    %v77 = vmul.f32 %v44, %v76
    %v78 = vmul.f32 %v45, %v76
    %v79 = vmul.f32 %v46, %v76
    %v80 = vmul.f32 %v47, %v76
    %v81 = vmul.f32 %v48, %v76
    %v82 = vmul.f32 %v49, %v76
    %v83 = vmul.f32 %v50, %v76
    %v84 = vmul.f32 %v51, %v76
    %v85 = vmul.f32 %v52, %v76
    %v86 = vmul.f32 %v53, %v76
    %v87 = vmul.f32 %v54, %v76
    %v88 = vmul.f32 %v55, %v76
    %v89 = vmul.f32 %v56, %v76
    %v90 = vmul.f32 %v57, %v76
    %v91 = vmul.f32 %v58, %v76
    %v92 = vmul.f32 %v59, %v76
    %v93 = vmul.f32 %v60, %v76
    %v94 = vmul.f32 %v61, %v76
    %v95 = vmul.f32 %v62, %v76
    %v96 = vmul.f32 %v63, %v76
    %v97 = vmul.f32 %v64, %v76
    %v98 = vmul.f32 %v65, %v76
    %v99 = vmul.f32 %v66, %v76
    %v100 = vmul.f32 %v67, %v76
    %v101 = vmul.f32 %v68, %v76
    %v102 = vmul.f32 %v69, %v76
    %v103 = vmul.f32 %v70, %v76
    %v104 = vmul.f32 %v71, %v76
    %v105 = vmul.f32 %v72, %v76
    %v106 = vmul.f32 %v73, %v76
    %v107 = vmul.f32 %v74, %v76
    %v108 = vmul.f32 %v75, %v76
    %v109 = vperm.slane %v43, 0
    %v110 = vadd.f32 %v77, %v109
    %v111 = vadd.f32 %v78, %v109
    %v112 = vadd.f32 %v79, %v109
    %v113 = vadd.f32 %v80, %v109
    %v114 = vadd.f32 %v81, %v109
    %v115 = vadd.f32 %v82, %v109
    %v116 = vadd.f32 %v83, %v109
    %v117 = vadd.f32 %v84, %v109
    %v118 = vadd.f32 %v85, %v109
    %v119 = vadd.f32 %v86, %v109
    %v120 = vadd.f32 %v87, %v109
    %v121 = vadd.f32 %v88, %v109
    %v122 = vadd.f32 %v89, %v109
    %v123 = vadd.f32 %v90, %v109
    %v124 = vadd.f32 %v91, %v109
    %v125 = vadd.f32 %v92, %v109
    %v126 = vadd.f32 %v93, %v109
    %v127 = vadd.f32 %v94, %v109
    %v128 = vadd.f32 %v95, %v109
    %v129 = vadd.f32 %v96, %v109
    %v130 = vadd.f32 %v97, %v109
    %v131 = vadd.f32 %v98, %v109
    %v132 = vadd.f32 %v99, %v109
    %v133 = vadd.f32 %v100, %v109
    %v134 = vadd.f32 %v101, %v109
    %v135 = vadd.f32 %v102, %v109
    %v136 = vadd.f32 %v103, %v109
    %v137 = vadd.f32 %v104, %v109
    %v138 = vadd.f32 %v105, %v109
    %v139 = vadd.f32 %v106, %v109
    %v140 = vadd.f32 %v107, %v109
    %v141 = vadd.f32 %v108, %v109
    %142 = vst [vmem:[#allocation7] sm:$0xff] %v110
    %143 = vst [vmem:[#allocation7 + $0x8] sm:$0xff] %v111
    %144 = vst [vmem:[#allocation7 + $0x10] sm:$0xff] %v112
    %145 = vst [vmem:[#allocation7 + $0x18] sm:$0xff] %v113
    %146 = vst [vmem:[#allocation7 + $0x20] sm:$0xff] %v114
    %147 = vst [vmem:[#allocation7 + $0x28] sm:$0xff] %v115
    %148 = vst [vmem:[#allocation7 + $0x30] sm:$0xff] %v116
    %149 = vst [vmem:[#allocation7 + $0x38] sm:$0xff] %v117
    %150 = vst [vmem:[#allocation7 + $0x40] sm:$0xff] %v118
    %151 = vst [vmem:[#allocation7 + $0x48] sm:$0xff] %v119
    %152 = vst [vmem:[#allocation7 + $0x50] sm:$0xff] %v120
    %153 = vst [vmem:[#allocation7 + $0x58] sm:$0xff] %v121
    %154 = vst [vmem:[#allocation7 + $0x60] sm:$0xff] %v122
    %155 = vst [vmem:[#allocation7 + $0x68] sm:$0xff] %v123
    %156 = vst [vmem:[#allocation7 + $0x70] sm:$0xff] %v124
    %157 = vst [vmem:[#allocation7 + $0x78] sm:$0xff] %v125
    %158 = vst [vmem:[#allocation7 + $0x80] sm:$0xff] %v126
    %159 = vst [vmem:[#allocation7 + $0x88] sm:$0xff] %v127
    %160 = vst [vmem:[#allocation7 + $0x90] sm:$0xff] %v128
    %161 = vst [vmem:[#allocation7 + $0x98] sm:$0xff] %v129
    %162 = vst [vmem:[#allocation7 + $0xa0] sm:$0xff] %v130
    %163 = vst [vmem:[#allocation7 + $0xa8] sm:$0xff] %v131
    %164 = vst [vmem:[#allocation7 + $0xb0] sm:$0xff] %v132
    %165 = vst [vmem:[#allocation7 + $0xb8] sm:$0xff] %v133
    %166 = vst [vmem:[#allocation7 + $0xc0] sm:$0xff] %v134
    %167 = vst [vmem:[#allocation7 + $0xc8] sm:$0xff] %v135
    %168 = vst [vmem:[#allocation7 + $0xd0] sm:$0xff] %v136
    %169 = vst [vmem:[#allocation7 + $0xd8] sm:$0xff] %v137
    %170 = vst [vmem:[#allocation7 + $0xe0] sm:$0xff] %v138
    %171 = vst [vmem:[#allocation7 + $0xe8] sm:$0xff] %v139
    %172 = vst [vmem:[#allocation7 + $0xf0] sm:$0xff] %v140
    %173 = vst [vmem:[#allocation7 + $0xf8] sm:$0xff] %v141
    // Predicated region
    $region18: #{tpu_custom_call.1} parent=1 // pred_check
      _
    $region19: #{tpu_custom_call.1} parent=1 // pred_check_branch
      %175 = sbr.rel (0) target = $region21
    $region20: #{tpu_custom_call.1} parent=1 // pred_region
      %177 = vsyncadd [#allocation4], 0
      %s178 = sshll.u32 [#allocation7], 4
      %s179 = int_to_ptr.vmem [resolvable:$true] %s178
      %s180 = sshll.u32 %s2, 4
      %s181 = int_to_ptr.hbm [resolvable:$true] %s180
      %186 = dma.vmem_to_hbm [thread:$0]  %s179, 4096, %s181, [#allocation4], 128, 128, 8
    $region21: #{tpu_custom_call.1} parent=1 // pred_fallthru
      _
    // Predicated region
    $region22: #{tpu_custom_call.1} parent=1 // pred_check
      _
    $region23: #{tpu_custom_call.1} parent=1 // pred_check_branch
      %188 = sbr.rel (0) target = $region25
    $region24: #{tpu_custom_call.1} parent=1 // pred_region
      %190 = dma.done [#allocation4], 4096
    $region25: #{tpu_custom_call.1} parent=1 // pred_fallthru
      _
    %191 = vsyncpa [#allocation3], 1
    %192 = vsyncpa [#allocation6], 1
    %193 = vsyncpa [#allocation4], 1

</llo_original>
